<compile_context>
chip_gen: v5e
topology: v5e:2x2
jax: 0.10.0
libtpu: 0.0.40
codegen_flags: <defaults>
</compile_context>

<pallas_src>
import jax
import jax.numpy as jnp
from jax.experimental import pallas as pl
from jax.experimental.pallas import tpu as pltpu


def _round_up(x, m):
    return ((x + m - 1) // m) * m


def make_st_aggregation(rois, in_channel, out_channel, dim, pt=3,
                        neg_slope=0.01):
    k = dim // pt                      # pooling window along time
    t_out = dim // k                   # pooled time length (AvgPool2d truncates)
    k_dim = rois * dim * in_channel    # matmul contraction size
    n_out = t_out * out_channel        # matmul output width (lane-dense store)

    def kernel(x_ref, w_ref, b_ref, o_ref):
        # One MXU matmul performs pooling + channel-cat + NodeConv, f32 acc.
        acc = jnp.dot(x_ref[...].astype(jnp.float32), w_ref[...],
                      preferred_element_type=jnp.float32)
        acc = acc + b_ref[...]                              # (TB, t_out*O)
        acc = jnp.where(acc >= 0, acc, neg_slope * acc)     # LeakyReLU(0.01)
        o_ref[...] = acc.astype(o_ref.dtype)

    def forward(x, weight, bias):
        # x      : (B, rois, dim, in_channel)            -- pre-permute layout
        # weight : (out_channel, 2*in_channel, rois, 1)  -- PyTorch Conv2d layout
        # bias   : (out_channel,)
        B = x.shape[0]

        # ---- Host-side folding: cat-duplication + 1/k pool scale + pooling ----
        w = weight[:, :, :, 0].astype(jnp.float32)                # (O, 2C, rois)
        w_pair = w[:, :in_channel, :] + w[:, in_channel:, :]      # (O, C, rois)
        w_eff = jnp.transpose(w_pair, (2, 1, 0))                  # (rois, C, O)
        t_idx = jnp.arange(t_out)[:, None]
        j_idx = jnp.arange(dim)[None, :]
        pool = (((j_idx >= t_idx * k) & (j_idx < (t_idx + 1) * k))
                .astype(jnp.float32) / k)                         # (t_out, dim)
        w_mat = jnp.einsum('tj,rco->rjcto', pool, w_eff).reshape(k_dim, n_out)
        b_mat = jnp.tile(bias.astype(jnp.float32), (t_out,)).reshape(1, n_out)

        # ---- Lane-dense input presentation + batch tiling ----
        x_flat = x.reshape(B, k_dim)
        b_pad8 = _round_up(B, 8)
        if b_pad8 < 16:
            tb = b_pad8                                   # single small block
        else:
            tb = max(8, min(128, _round_up(b_pad8 // 2, 8)))  # grid >= 2
        b_pad = _round_up(B, tb)
        if b_pad != B:
            x_flat = jnp.pad(x_flat, ((0, b_pad - B), (0, 0)))
        grid = (b_pad // tb,)

        # VMEM budget: double-buffered in/out blocks + resident weight + slack,
        # clamped below v7x's 64 MiB physical VMEM.
        in_block = tb * k_dim * 4
        out_block = tb * n_out * 4
        w_bytes = k_dim * n_out * 4
        vmem_limit = min(64 << 20,
                         max(2 << 20,
                             2 * (in_block + out_block + w_bytes) + (1 << 20)))

        out_flat = pl.pallas_call(
            kernel,
            out_shape=jax.ShapeDtypeStruct((b_pad, n_out), x.dtype),
            grid_spec=pltpu.PrefetchScalarGridSpec(
                num_scalar_prefetch=0,
                grid=grid,
                in_specs=[
                    pl.BlockSpec((tb, k_dim), lambda i: (i, 0)),
                    pl.BlockSpec((k_dim, n_out), lambda i: (0, 0)),
                    pl.BlockSpec((1, n_out), lambda i: (0, 0)),
                ],
                out_specs=pl.BlockSpec((tb, n_out), lambda i: (i, 0)),
            ),
            compiler_params=pltpu.CompilerParams(
                dimension_semantics=("parallel",),
                vmem_limit_bytes=vmem_limit),
        )(x_flat, w_mat, b_mat)

        # ---- Free wrapper-side layout plumbing back to the module's output ----
        out = out_flat[:B].reshape(B, t_out, out_channel)
        return out[:, None, :, :]                   # (B, 1, t_out, out_channel)

    return forward


def reference(x, weight, bias, rois, in_channel, out_channel, dim, pt=3,
              neg_slope=0.01):
    """Pure-JAX replica of the PyTorch forward, for correctness checking."""
    k = dim // pt
    t_out = dim // k
    B = x.shape[0]
    xp = jnp.transpose(x, (0, 3, 1, 2))                   # (B, C, rois, dim)
    xp = xp[..., :t_out * k].reshape(B, in_channel, rois, t_out, k)
    pooled = xp.mean(axis=-1)                             # (B, C, rois, T_out)
    cat = jnp.concatenate([pooled, pooled], axis=1)       # (B, 2C, rois, T_out)
    out = jnp.einsum('bcrt,ocr->bot', cat, weight[:, :, :, 0])
    out = out + bias[None, :, None]                       # (B, O, T_out)
    out = jnp.where(out >= 0, out, neg_slope * out)
    out = out[:, :, None, :]                              # (B, O, 1, T_out)
    return jnp.transpose(out, (0, 2, 3, 1))               # (B, 1, T_out, O)


if __name__ == "__main__":
    # Small shapes consistent with the module: H = rois, W = dim, C = in_channel.
    B, rois, in_channel, out_channel, dim, pt = 16, 4, 4, 8, 12, 3

    key = jax.random.PRNGKey(0)
    kx, kw, kb = jax.random.split(key, 3)
    x = jax.random.normal(kx, (B, rois, dim, in_channel), dtype=jnp.float32)
    # Conv2d(2*in_channel, out_channel, kernel_size=(rois, 1)) parameters.
    weight = 0.1 * jax.random.normal(
        kw, (out_channel, 2 * in_channel, rois, 1), dtype=jnp.float32)
    bias = 0.1 * jax.random.normal(kb, (out_channel,), dtype=jnp.float32)

    fwd = make_st_aggregation(rois, in_channel, out_channel, dim, pt)
    out = jax.block_until_ready(fwd(x, weight, bias))

    ref = reference(x, weight, bias, rois, in_channel, out_channel, dim, pt)
    assert out.shape == (B, 1, dim // (dim // pt), out_channel), out.shape
    assert jnp.allclose(out, ref, atol=1e-4, rtol=1e-4), "mismatch vs reference"

    print("KERNEL_OK")
</pallas_src>

<mosaic_0001>
module attributes {stable_mosaic.version = 11 : i64} {
  func.func @kernel(%arg0: i32, %arg1: memref<8x192xf32, #tpu.memory_space<vmem>>, %arg2: memref<192x24xf32, #tpu.memory_space<vmem>>, %arg3: memref<1x24xf32, #tpu.memory_space<vmem>>, %arg4: memref<8x24xf32, #tpu.memory_space<vmem>>) attributes {dimension_semantics = [#tpu.dimension_semantics<parallel>], iteration_bounds = array<i64: 2>, scalar_prefetch = 0 : i64, scratch_operands = 0 : i64, tpu.core_type = #tpu.core_type<tc>, window_params = [{transform_indices = @transform_0, window_bounds = array<i64: 8, 192>}, {pipeline_mode = #tpu.pipeline_mode<synchronous>, transform_indices = @transform_1, window_bounds = array<i64: 192, 24>}, {pipeline_mode = #tpu.pipeline_mode<synchronous>, transform_indices = @transform_2, window_bounds = array<i64: 1, 24>}, {transform_indices = @transform_3, window_bounds = array<i64: 8, 24>}]} {
    %c0 = arith.constant 0 : index
    %c0_0 = arith.constant 0 : index
    %0 = vector.load %arg1[%c0, %c0_0] : memref<8x192xf32, #tpu.memory_space<vmem>>, vector<8x192xf32>
    %c0_1 = arith.constant 0 : index
    %c0_2 = arith.constant 0 : index
    %1 = vector.load %arg2[%c0_1, %c0_2] : memref<192x24xf32, #tpu.memory_space<vmem>>, vector<192x24xf32>
    %cst = arith.constant dense<0.000000e+00> : vector<8x24xf32>
    %2 = tpu.matmul %0, %1, %cst {dimension_numbers = #tpu.dot_dimension_numbers<[1], [0], [0], [1], [0, 0, 1, 1], [], []>} : vector<8x192xf32>, vector<192x24xf32>, vector<8x24xf32> -> vector<8x24xf32>
    %c0_3 = arith.constant 0 : index
    %c0_4 = arith.constant 0 : index
    %3 = vector.load %arg3[%c0_3, %c0_4] : memref<1x24xf32, #tpu.memory_space<vmem>>, vector<1x24xf32>
    %4 = vector.broadcast %3 : vector<1x24xf32> to vector<8x24xf32>
    %5 = arith.addf %2, %4 : vector<8x24xf32>
    %cst_5 = arith.constant 0.000000e+00 : f32
    %6 = vector.broadcast %cst_5 : f32 to vector<8x24xf32>
    %7 = arith.cmpf oge, %5, %6 : vector<8x24xf32>
    %cst_6 = arith.constant 0.00999999977 : f32
    %8 = vector.broadcast %cst_6 : f32 to vector<8x24xf32>
    %9 = arith.mulf %8, %5 : vector<8x24xf32>
    %10 = arith.select %7, %5, %9 : vector<8x24xi1>, vector<8x24xf32>
    %c0_7 = arith.constant 0 : index
    %c0_8 = arith.constant 0 : index
    %11 = vector.load %arg4[%c0_7, %c0_8] : memref<8x24xf32, #tpu.memory_space<vmem>>, vector<8x24xf32>
    tpu.vector_store %arg4[%c0_7, %c0_8], %10 {strides = array<i32>} : memref<8x24xf32, #tpu.memory_space<vmem>>, vector<8x24xf32>,
    return
  }
  func.func @transform_0(%arg0: i32) -> (i32, i32) {
    %c0_i32 = arith.constant 0 : i32
    %c0_i32_0 = arith.constant 0 : i32
    return %arg0, %c0_i32 : i32, i32
  }
  func.func @transform_1(%arg0: i32) -> (i32, i32) {
    %c0_i32 = arith.constant 0 : i32
    %c0_i32_0 = arith.constant 0 : i32
    %c0_i32_1 = arith.constant 0 : i32
    return %c0_i32, %c0_i32_0 : i32, i32
  }
  func.func @transform_2(%arg0: i32) -> (i32, i32) {
    %c0_i32 = arith.constant 0 : i32
    %c0_i32_0 = arith.constant 0 : i32
    %c0_i32_1 = arith.constant 0 : i32
    return %c0_i32, %c0_i32_0 : i32, i32
  }
  func.func @transform_3(%arg0: i32) -> (i32, i32) {
    %c0_i32 = arith.constant 0 : i32
    %c0_i32_0 = arith.constant 0 : i32
    return %arg0, %c0_i32 : i32, i32
  }
}

</mosaic_0001>

<llo_original>
// kernel: tpu_custom_call.1
$region0: #{tpu_custom_call.1}
  #allocation0 [shape = 'u32[]', space=smem, size = 0x4, offset = 0x4, fixed_abs, tag = 'smem constant byte address 0x4 - core index']
  #allocation1 [shape = 'u32[72,128]{1,0:T(1,128)}', space=vmem, size = 0x9000, scoped, tag = 'internal scratch']
  %s0 = inlined_call_operand.vmem [shape: f32[16,192], index: 0, kind: input, shape index: {}]
  %s1 = inlined_call_operand.vmem [shape: f32[192,24], index: 1, kind: input, shape index: {}]
  %s2 = inlined_call_operand.vmem [shape: f32[1,24], index: 2, kind: input, shape index: {}]
  %s3 = inlined_call_operand.hbm [shape: f32[16,24], index: 3, kind: output, shape index: {}]
  %s4 = sld [smem:[#allocation0]]
  $region45: #{tpu_custom_call.1} parent=0
    _
  %s6 = ssub.s32 1, %s4
  %s7 = scalar_select 0, %s6, %s4
  $region1: #{tpu_custom_call.1} parent=0
    #allocation2 [shape = 'u8[8192]{0}', space=vmem, size = 0x2000, scoped, tag = 'output window, operand 0']
    #allocation3 [shape = 's32[2]{0}', space=sflag, size = 0x8, scoped, tag = 'scoped memory for tpu_custom_call.1']
    %8 = vsyncpa [#allocation3], 0
    %s9 = scalar_lea.sflag [#allocation3], 1
    %10 = vsyncpa %s9, 0
    loop: start=0, step=1, limit=4
    $region2: #{tpu_custom_call.1} parent=1 // loop_pre_header
      _
    $region3: #{tpu_custom_call.1} parent=1 // loop_header
      %s12 = sphi 0, %s16
      %p13 = scmp.ge.s32.totalorder %s12, 4
      %s22 = sphi 0, %s24
      %s25 = sphi 0, %s22
      %s26 = sphi 0, %s25
      %s42 = sphi 0, %s26
      %s46 = sphi 0, %s46
      %s48 = sphi 0, %s46
      %s49 = sphi 0, %s48
      %s63 = sphi 0, %s49
      %s67 = sphi 0, %s67
      %s69 = sphi 0, %s67
      %s70 = sphi 0, %s69
      %s84 = sphi 0, %s70
      %s90 = sphi 0, %s92
      %s93 = sphi 0, %s90
      %s94 = sphi 0, %s93
      %s110 = sphi 0, %s94
    $region4: #{tpu_custom_call.1} parent=1 // loop_header_branch
      %15 = sbr.rel (%p13) target = $region8
    $region5: #{tpu_custom_call.1} parent=1 // loop_body
      %s17 = ssub.s32 %s12, 1
      %s18 = ssub.s32 %s12, 2
      %s19 = sadd.s32 %s12, 1
      %s20 = ssub.s32 %s12, %s19
      %p21 = scmp.eq.s32.totalorder %s20, 0
      %s23 = sadd.s32 %s22, 1
      %s24 = scalar_select %p21, %s22, %s23
      %p27 = pneg %p21
      %p28 = scmp.eq.s32.totalorder %s12, 1
      %p29 = por %p27, %p28
      %p30 = scmp.ne.s32.totalorder %s22, %s25
      %p31 = scmp.eq.s32.totalorder %s12, 0
      %p32 = por %p30, %p31
      %p33 = scmp.ne.s32.totalorder %s22, %s25
      %p34 = scmp.eq.s32.totalorder %s17, 1
      %p35 = por %p33, %p34
      %p36 = scmp.ne.s32.totalorder %s25, %s26
      %p37 = scmp.eq.s32.totalorder %s17, 0
      %p38 = por %p36, %p37
      %p39 = scmp.ne.s32.totalorder %s25, %s26
      %p40 = scmp.eq.s32.totalorder %s18, 1
      %p41 = por %p39, %p40
      %p43 = scmp.ne.s32.totalorder %s26, %s42
      %p44 = scmp.eq.s32.totalorder %s18, 0
      %p45 = por %p43, %p44
      %s47 = sadd.s32 %s46, 1
      %p50 = scmp.eq.s32.totalorder %s12, 1
      %p51 = scmp.ne.s32.totalorder %s46, %s48
      %p52 = scmp.eq.s32.totalorder %s12, 0
      %p53 = por %p51, %p52
      %p54 = scmp.ne.s32.totalorder %s46, %s48
      %p55 = scmp.eq.s32.totalorder %s17, 1
      %p56 = por %p54, %p55
      %p57 = scmp.ne.s32.totalorder %s48, %s49
      %p58 = scmp.eq.s32.totalorder %s17, 0
      %p59 = por %p57, %p58
      %p60 = scmp.ne.s32.totalorder %s48, %s49
      %p61 = scmp.eq.s32.totalorder %s18, 1
      %p62 = por %p60, %p61
      %p64 = scmp.ne.s32.totalorder %s49, %s63
      %p65 = scmp.eq.s32.totalorder %s18, 0
      %p66 = por %p64, %p65
      %s68 = sadd.s32 %s67, 1
      %p71 = scmp.eq.s32.totalorder %s12, 1
      %p72 = scmp.ne.s32.totalorder %s67, %s69
      %p73 = scmp.eq.s32.totalorder %s12, 0
      %p74 = por %p72, %p73
      %p75 = scmp.ne.s32.totalorder %s67, %s69
      %p76 = scmp.eq.s32.totalorder %s17, 1
      %p77 = por %p75, %p76
      %p78 = scmp.ne.s32.totalorder %s69, %s70
      %p79 = scmp.eq.s32.totalorder %s17, 0
      %p80 = por %p78, %p79
      %p81 = scmp.ne.s32.totalorder %s69, %s70
      %p82 = scmp.eq.s32.totalorder %s18, 1
      %p83 = por %p81, %p82
      %p85 = scmp.ne.s32.totalorder %s70, %s84
      %p86 = scmp.eq.s32.totalorder %s18, 0
      %p87 = por %p85, %p86
      %s88 = ssub.s32 %s12, %s19
      %p89 = scmp.eq.s32.totalorder %s88, 0
      %s91 = sadd.s32 %s90, 1
      %s92 = scalar_select %p89, %s90, %s91
      %p95 = pneg %p89
      %p96 = scmp.eq.s32.totalorder %s12, 1
      %p97 = por %p95, %p96
      %p98 = scmp.ne.s32.totalorder %s90, %s93
      %p99 = scmp.eq.s32.totalorder %s12, 0
      %p100 = por %p98, %p99
      %p101 = scmp.ne.s32.totalorder %s90, %s93
      %p102 = scmp.eq.s32.totalorder %s17, 1
      %p103 = por %p101, %p102
      %p104 = scmp.ne.s32.totalorder %s93, %s94
      %p105 = scmp.eq.s32.totalorder %s17, 0
      %p106 = por %p104, %p105
      %p107 = scmp.ne.s32.totalorder %s93, %s94
      %p108 = scmp.eq.s32.totalorder %s18, 1
      %p109 = por %p107, %p108
      %p111 = scmp.ne.s32.totalorder %s94, %s110
      %p112 = scmp.eq.s32.totalorder %s18, 0
      %p113 = por %p111, %p112
      %p114 = scmp.le.s32.totalorder 1, %s12
      %p115 = scmp.lt.s32.totalorder %s12, 3
      %p116 = pnand %p114, %p115
      %p117 = pneg %p116
      // Predicated region
      $region9: #{tpu_custom_call.1} parent=5 // pred_check
        _
      $region10: #{tpu_custom_call.1} parent=5 // pred_check_branch
        %119 = sbr.rel (%p116) target = $region12
      $region11: #{tpu_custom_call.1} parent=5 // pred_region
        %s120 = ssub.s32 %s12, 1
        // Predicated region
        $region13: #{tpu_custom_call.1} parent=11 // pred_check
          %p121 = pneg %p59
        $region14: #{tpu_custom_call.1} parent=11 // pred_check_branch
          %123 = sbr.rel (%p121) target = $region16
        $region15: #{tpu_custom_call.1} parent=11 // pred_region
          _
        $region16: #{tpu_custom_call.1} parent=11 // pred_fallthru
          _
        // Predicated region
        $region17: #{tpu_custom_call.1} parent=11 // pred_check
          %p124 = pneg %p80
        $region18: #{tpu_custom_call.1} parent=11 // pred_check_branch
          %126 = sbr.rel (%p124) target = $region20
        $region19: #{tpu_custom_call.1} parent=11 // pred_region
          _
        $region20: #{tpu_custom_call.1} parent=11 // pred_fallthru
          _
      $region12: #{tpu_custom_call.1} parent=5 // pred_fallthru
        _
      %p127 = scmp.lt.s32.totalorder %s12, 2
      // Predicated region
      $region21: #{tpu_custom_call.1} parent=5 // pred_check
        %p128 = pneg %p127
      $region22: #{tpu_custom_call.1} parent=5 // pred_check_branch
        %130 = sbr.rel (%p128) target = $region24
      $region23: #{tpu_custom_call.1} parent=5 // pred_region
        // Predicated region
        $region25: #{tpu_custom_call.1} parent=23 // pred_check
          %p131 = pneg %p32
        $region26: #{tpu_custom_call.1} parent=23 // pred_check_branch
          %133 = sbr.rel (%p131) target = $region28
        $region27: #{tpu_custom_call.1} parent=23 // pred_region
          %p134 = scmp.lt.s32.totalorder %s12, 1
          %s135 = scalar_select %p134, %s12, 1
          %s136 = smul.addr %s135, 2
          %s137 = smul.addr %s136, 8
          %s138 = scalar_lea.vmem %s0, %s137
        $region28: #{tpu_custom_call.1} parent=23 // pred_fallthru
          _
      $region24: #{tpu_custom_call.1} parent=5 // pred_fallthru
        _
      %p139 = scmp.le.s32.totalorder 1, %s12
      %p140 = scmp.lt.s32.totalorder %s12, 3
      %p141 = pnand %p139, %p140
      %p142 = pneg %p141
      // Predicated region
      $region29: #{tpu_custom_call.1} parent=5 // pred_check
        _
      $region30: #{tpu_custom_call.1} parent=5 // pred_check_branch
        %144 = sbr.rel (%p141) target = $region32
      $region31: #{tpu_custom_call.1} parent=5 // pred_region
        %s145 = ssub.s32 %s12, 1
        %p146 = scmp.lt.s32.totalorder %s17, 1
        %s147 = scalar_select %p146, %s17, 1
        %s148 = smul.addr %s147, 2
        %s149 = smul.addr %s148, 8
        %s150 = scalar_lea.vmem %s0, %s149
        %p151 = pneg %p38
        %p152 = pneg %p35
        %p153 = pneg %p59
        %p154 = pneg %p56
        %p155 = pneg %p80
        %p156 = pneg %p77
        %p157 = pneg %p106
        %p158 = pneg %p103
        %s159 = sand.u32 %s93, 1
        %s160 = scalar_lea.sflag [#allocation3], %s159
        %s161 = sand.u32 %s93, 1
        %s162 = smul.addr %s161, 8
        %s163 = scalar_lea.vmem [#allocation2], %s162
        %p164 = scmp.lt.s32.totalorder %s17, 1
        %s165 = scalar_select %p164, %s17, 1
        %s166 = smul.addr %s165, 2
        %s167 = smul.addr %s166, 8
        %s168 = scalar_lea.vmem %s0, %s167
        %v169 = vld [vmem:[%s168] sm:$0xff]
        %v170 = vld [vmem:[%s168 + $0x8] sm:$0xff]
        %v171 = vld [vmem:[%s1] sm:$0xff]
        %v172 = vld [vmem:[%s1 + $0x8] sm:$0xff]
        %v173 = vld [vmem:[%s1 + $0x10] sm:$0xff]
        %v174 = vld [vmem:[%s1 + $0x18] sm:$0xff]
        %v175 = vld [vmem:[%s1 + $0x20] sm:$0xff]
        %v176 = vld [vmem:[%s1 + $0x28] sm:$0xff]
        %v177 = vld [vmem:[%s1 + $0x30] sm:$0xff]
        %v178 = vld [vmem:[%s1 + $0x38] sm:$0xff]
        %v179 = vld [vmem:[%s1 + $0x40] sm:$0xff]
        %v180 = vld [vmem:[%s1 + $0x48] sm:$0xff]
        %v181 = vld [vmem:[%s1 + $0x50] sm:$0xff]
        %v182 = vld [vmem:[%s1 + $0x58] sm:$0xff]
        %v183 = vld [vmem:[%s1 + $0x60] sm:$0xff]
        %v184 = vld [vmem:[%s1 + $0x68] sm:$0xff]
        %v185 = vld [vmem:[%s1 + $0x70] sm:$0xff]
        %v186 = vld [vmem:[%s1 + $0x78] sm:$0xff]
        %v187 = vld [vmem:[%s1 + $0x80] sm:$0xff]
        %v188 = vld [vmem:[%s1 + $0x88] sm:$0xff]
        %v189 = vld [vmem:[%s1 + $0x90] sm:$0xff]
        %v190 = vld [vmem:[%s1 + $0x98] sm:$0xff]
        %v191 = vld [vmem:[%s1 + $0xa0] sm:$0xff]
        %v192 = vld [vmem:[%s1 + $0xa8] sm:$0xff]
        %v193 = vld [vmem:[%s1 + $0xb0] sm:$0xff]
        %v194 = vld [vmem:[%s1 + $0xb8] sm:$0xff]
        %v195 = vld [vmem:[%s2] sm:$0x1]
        %v197 = vperm.slane %v195, 0
        %vm199 = vcmask 523264
        %v201 = vsel %vm199, %v170, 0
        %203 = vmatpush.msra.mxu0 %v186
        %204 = vmatpush.msra.mxu0 %v185
        %205 = vmatpush.msra.mxu0 %v184
        %206 = vmatpush.msra.mxu0 %v183
        %207 = vmatpush.msra.mxu0 %v182
        %208 = vmatpush.msra.mxu0 %v181
        %209 = vmatpush.msra.mxu0 %v180
        %210 = vmatpush.msra.mxu0 %v179
        %211 = vmatpush.msra.mxu0 %v178
        %212 = vmatpush.msra.mxu0 %v177
        %213 = vmatpush.msra.mxu0 %v176
        %214 = vmatpush.msra.mxu0 %v175
        %215 = vmatpush.msra.mxu0 %v174
        %216 = vmatpush.msra.mxu0 %v173
        %217 = vmatpush.msra.mxu0 %v172
        %218 = vmatpush.msra.mxu0 %v171
        %219 = vmatmul.f32.gmra.mxu0 %v169
        %v220 = vpop.f32.mrf.mxu0
        %v221 = vadd.f32 %v197, %v220
        %222 = vdwg.mxu0
        %223 = vmatpush.msra.mxu0 0.0
        %224 = vmatpush.msra.mxu0 0.0
        %225 = vmatpush.msra.mxu0 0.0
        %226 = vmatpush.msra.mxu0 0.0
        %227 = vmatpush.msra.mxu0 0.0
        %228 = vmatpush.msra.mxu0 0.0
        %229 = vmatpush.msra.mxu0 0.0
        %230 = vmatpush.msra.mxu0 0.0
        %231 = vmatpush.msra.mxu0 %v194
        %232 = vmatpush.msra.mxu0 %v193
        %233 = vmatpush.msra.mxu0 %v192
        %234 = vmatpush.msra.mxu0 %v191
        %235 = vmatpush.msra.mxu0 %v190
        %236 = vmatpush.msra.mxu0 %v189
        %237 = vmatpush.msra.mxu0 %v188
        %238 = vmatpush.msra.mxu0 %v187
        %239 = vmatmul.f32.gmra.mxu0 %v201
        %v240 = vpop.f32.mrf.mxu0
        %v241 = vadd.f32 %v221, %v240
        %242 = vdwg.mxu0
        %vm243 = vcmp.ge.f32.partialorder %v241, 0.0
        %v244 = vmul.f32 %v241, 0.01
        %v245 = vsel %vm243, %v241, %v244
        %vm246 = vcmask 195584
        %247 = vst.msk [vmem:[%s163] sm:$0xff] %vm246, %v245
        %s248 = sand.u32 %s93, 1
        %s249 = scalar_lea.sflag [#allocation3], %s248
        %s250 = sand.u32 %s93, 1
        %s251 = smul.addr %s250, 8
        %s252 = scalar_lea.vmem [#allocation2], %s251
        // Predicated region
        $region33: #{tpu_custom_call.1} parent=31 // pred_check
          %p253 = pneg %p103
        $region34: #{tpu_custom_call.1} parent=31 // pred_check_branch
          %255 = sbr.rel (%p253) target = $region36
        $region35: #{tpu_custom_call.1} parent=31 // pred_region
          %257 = vsyncadd %s249, 0
          %s258 = smul.addr %s17, 8
          %s259 = scalar_lea.hbm %s3, %s258
          %s261 = sshll.u32 %s252, 4
          %s262 = int_to_ptr.vmem [resolvable:$true] %s261
          %s263 = sshll.u32 %s259, 4
          %s264 = int_to_ptr.hbm [resolvable:$true] %s263
          %266 = dma.vmem_to_hbm [thread:$0]  %s262, 128, %s264, %s249
        $region36: #{tpu_custom_call.1} parent=31 // pred_fallthru
          _
      $region32: #{tpu_custom_call.1} parent=5 // pred_fallthru
        _
      %p267 = scmp.le.s32.totalorder 2, %s12
      // Predicated region
      $region37: #{tpu_custom_call.1} parent=5 // pred_check
        %p268 = pneg %p267
      $region38: #{tpu_custom_call.1} parent=5 // pred_check_branch
        %270 = sbr.rel (%p268) target = $region40
      $region39: #{tpu_custom_call.1} parent=5 // pred_region
        %s271 = ssub.s32 %s12, 2
        // Predicated region
        $region41: #{tpu_custom_call.1} parent=39 // pred_check
          %p272 = pneg %p109
        $region42: #{tpu_custom_call.1} parent=39 // pred_check_branch
          %274 = sbr.rel (%p272) target = $region44
        $region43: #{tpu_custom_call.1} parent=39 // pred_region
          %s275 = sand.u32 %s94, 1
          %s276 = scalar_lea.sflag [#allocation3], %s275
          %s277 = sand.u32 %s94, 1
          %s278 = smul.addr %s277, 8
          %s279 = scalar_lea.vmem [#allocation2], %s278
          %281 = dma.done %s276, 128
        $region44: #{tpu_custom_call.1} parent=39 // pred_fallthru
          _
      $region40: #{tpu_custom_call.1} parent=5 // pred_fallthru
        _
    $region6: #{tpu_custom_call.1} parent=1 // loop_footer
      %s16 = sadd.s32 1, %s12
    $region7: #{tpu_custom_call.1} parent=1 // loop_footer_branch
      %11 = sbr.rel target = $region3
    $region8: #{tpu_custom_call.1} parent=1 // loop_exit
      _
    %282 = vsyncpa [#allocation3], 1
    %s283 = scalar_lea.sflag [#allocation3], 1
    %284 = vsyncpa %s283, 1

</llo_original>
